<compile_context>
chip_gen: v7x
topology: tpu7x:2x2x1
jax: 0.10.0
libtpu: 0.0.40
codegen_flags: <defaults>
</compile_context>

<pallas_src>
import jax
import jax.numpy as jnp
from jax.experimental import pallas as pl
from jax.experimental.pallas import tpu as pltpu


# ---------------------------------------------------------------------------
# Hardware-aware sizing helpers (generation aware: v5e/v6e 128 MiB, v7x 64 MiB)
# ---------------------------------------------------------------------------
def _vmem_capacity_bytes():
    try:
        info = pltpu.get_tpu_info()
        for name in ("vmem_capacity_bytes", "vmem_size_bytes", "vmem_bytes"):
            v = getattr(info, name, None)
            if v:
                return int(v)
    except Exception:
        pass
    return 64 << 20  # conservative (v7x-sized) fallback


_VMEM_CAP = _vmem_capacity_bytes()
# Per-buffer x-tile budget for the similarity kernel: ~1/8 of physical VMEM
# (2 pipelined input buffers + resident key + 2 output blocks + headroom),
# capped at 16 MiB.  128-MiB chips -> 16 MiB tiles, v7x -> 8 MiB tiles.
_X_TILE_BUDGET = int(min(16 << 20, max(2 << 20, _VMEM_CAP // 8)))
# Explicit scoped-VMEM limit handed to Mosaic — never sized to full physical VMEM.
_VMEM_LIMIT = int(min(96 << 20, (_VMEM_CAP * 3) // 4))


# ---------------------------------------------------------------------------
# Kernel B: batch-tiled mean-over-seq + L2-normalize + similarity matmul.
# Prompt key arrives transposed (D, P) and is normalized in-kernel (folds the
# old key-norm kernel in; the dot contracts ((1,),(0,)) -> no per-step transpose).
# ---------------------------------------------------------------------------
def _similarity_kernel(key_t_ref, x_ref, xnorm_ref, sim_ref):
    eps = jnp.float32(1e-12)

    kt = key_t_ref[...].astype(jnp.float32)                    # (D, P) resident
    k_sq = jnp.sum(kt * kt, axis=0, keepdims=True)             # (1, P)
    # NOTE: clamps the SQUARED sum at eps, matching L2P's own l2_normalize.
    k_norm_t = kt * jax.lax.rsqrt(jnp.maximum(k_sq, eps))

    x = x_ref[...].astype(jnp.float32)                         # (TB, N, D)
    x_mean = jnp.mean(x, axis=1)                               # (TB, D)
    x_sq = jnp.sum(x_mean * x_mean, axis=1, keepdims=True)
    x_norm = x_mean * jax.lax.rsqrt(jnp.maximum(x_sq, eps))
    xnorm_ref[...] = x_norm

    # (TB, D) @ (D, P) -> (TB, P); MXU-friendly orientation, no transpose.
    sim_ref[...] = jax.lax.dot_general(
        x_norm, k_norm_t,
        dimension_numbers=(((1,), (0,)), ((), ())),
        preferred_element_type=jnp.float32)


def _pick_batch_tile(B, N, D, budget_bytes):
    """Largest batch tile that divides B, fits the byte budget and keeps the
    2-D output blocks legal (tb % 8 == 0 or tb == B)."""
    if B <= 8:
        return B
    per_row = max(1, N * D * 4)
    start = max(8, (min(B, budget_bytes // per_row) // 8) * 8)
    for tb in range(start, 0, -8):
        if B % tb == 0:
            return tb
    return B  # fallback: monolithic block


def l2p_similarity(x_embed, prompt_key_t, *, tb=None):
    B, N, D = x_embed.shape
    _, P = prompt_key_t.shape
    if tb is None:
        tb = _pick_batch_tile(B, N, D, _X_TILE_BUDGET)
    grid = (B // tb,)
    return pl.pallas_call(
        _similarity_kernel,
        out_shape=(
            jax.ShapeDtypeStruct((B, D), jnp.float32),          # x_embed_norm
            jax.ShapeDtypeStruct((B, P), jnp.float32),          # similarity
        ),
        grid=grid,
        in_specs=[
            pl.BlockSpec((D, P), lambda i: (0, 0)),             # resident key^T
            pl.BlockSpec((tb, N, D), lambda i: (i, 0, 0)),      # batch tile
        ],
        out_specs=(
            pl.BlockSpec((tb, D), lambda i: (i, 0)),
            pl.BlockSpec((tb, P), lambda i: (i, 0)),
        ),
        compiler_params=pltpu.CompilerParams(
            dimension_semantics=("parallel",),                  # megacore on v7x
            vmem_limit_bytes=_VMEM_LIMIT),
    )(prompt_key_t, x_embed)


# ---------------------------------------------------------------------------
# Kernel C: fused prompt gather + concat with a VMEM-resident prompt pool.
# prompted_embedding[b] = concat(prompt[idx[b,0]], ..., prompt[idx[b,K-1]],
#                                x_embed[b])
# ---------------------------------------------------------------------------
def _make_gather_concat_kernel(K, L, tbc):
    def kernel(idx_ref, x_ref, prompt_ref, out_ref):
        b0 = pl.program_id(0) * tbc
        # Largest store first: the x tail for the whole row tile in one go.
        # NOTE: rows start at sublane offset K*L (misaligned when K*L % 8 != 0);
        # padding the prompt region would fix it but changes module semantics.
        out_ref[:, K * L:, :] = x_ref[...].astype(out_ref.dtype)
        # Gather selected prompts straight from the VMEM-resident pool:
        # no HBM DMAs, no staging buffer, no semaphores.
        for r in range(tbc):
            for k in range(K):
                p = idx_ref[(b0 + r) * K + k]
                out_ref[r, k * L:(k + 1) * L, :] = (
                    prompt_ref[p].astype(out_ref.dtype))
    return kernel


def _pick_rows_per_step(B, N, total_len, D, budget_bytes, max_rows=8):
    per_row = max(1, (N + total_len) * D * 4 * 2)   # in + out, double-buffered
    cap = max(1, min(max_rows, budget_bytes // per_row))
    for t in range(min(B, cap), 0, -1):
        if B % t == 0:
            return t
    return 1


def l2p_gather_concat(prompt, x_embed, idx_flat, *, top_k):
    B, N, D = x_embed.shape
    P, L, _ = prompt.shape
    K = top_k
    total_len = K * L + N
    tbc = _pick_rows_per_step(B, N, total_len, D, _VMEM_LIMIT // 2)
    kernel = _make_gather_concat_kernel(K, L, tbc)
    return pl.pallas_call(
        kernel,
        out_shape=jax.ShapeDtypeStruct((B, total_len, D), x_embed.dtype),
        grid_spec=pltpu.PrefetchScalarGridSpec(
            num_scalar_prefetch=1,                              # flat (B*K,) idx
            grid=(B // tbc,),
            in_specs=[
                pl.BlockSpec((tbc, N, D), lambda i, idx_ref: (i, 0, 0)),
                pl.BlockSpec((P, L, D), lambda i, idx_ref: (0, 0, 0)),  # resident pool
            ],
            out_specs=pl.BlockSpec((tbc, total_len, D),
                                   lambda i, idx_ref: (i, 0, 0)),
        ),
        compiler_params=pltpu.CompilerParams(
            dimension_semantics=("parallel",),
            vmem_limit_bytes=_VMEM_LIMIT),
    )(idx_flat, x_embed, prompt)


# ---------------------------------------------------------------------------
# Full forward (glue: tiny key-norm for dict outputs, top-k, small gathers)
# ---------------------------------------------------------------------------
def _l2_normalize(x, axis, eps=1e-12):
    sq = jnp.sum(x * x, axis=axis, keepdims=True)
    return x * jax.lax.rsqrt(jnp.maximum(sq, jnp.float32(eps)))


def l2p_prompt_forward(x_embed, prompt, prompt_key, *, top_k, prompt_mask=None):
    """Mirrors L2P_Prompt.forward with prompt_pool=True, prompt_key=True,
    embedding_key='mean', batchwise_prompt=False."""
    B, N, D = x_embed.shape
    P, L, _ = prompt.shape

    # Tiny (P, D) normalization for the dict outputs (glue); the similarity
    # kernel normalizes its own resident copy of the transposed key.
    prompt_norm = _l2_normalize(prompt_key.astype(jnp.float32), axis=1)
    prompt_key_t = jnp.transpose(prompt_key.astype(jnp.float32))   # (D, P)

    x_embed_norm, similarity = l2p_similarity(x_embed, prompt_key_t)

    if prompt_mask is None:
        sim_vals, idx = jax.lax.top_k(similarity, top_k)        # (B, K)
        # TODO(synk): batchwise_prompt=True path (torch.unique + count top-k) not implemented.
    else:
        idx = prompt_mask.astype(jnp.int32)
        sim_vals = jnp.take_along_axis(similarity, idx, axis=1)

    # reduce_sim == sum_{b,k} x_norm[b] . prompt_norm[idx[b,k]] / B
    #            == sum of the gathered similarity values / B  (no extra kernel).
    reduce_sim = jnp.sum(sim_vals) / jnp.float32(B)

    # Small (B, K, D) gather kept only because the module returns 'selected_key'.
    batched_key_norm = prompt_norm[idx]

    # Flat 1-D int32 scalar-prefetch idx (cheap SMEM padding); clamp so the
    # VMEM-resident gather can never read out of bounds (prompt_mask path).
    idx_flat = jnp.clip(idx, 0, P - 1).astype(jnp.int32).reshape(-1)
    prompted_embedding = l2p_gather_concat(prompt, x_embed, idx_flat,
                                           top_k=top_k)

    return {
        "prompt_idx": idx,
        "prompt_norm": prompt_norm,
        "x_embed_norm": x_embed_norm,
        "similarity": similarity,
        "selected_key": batched_key_norm,
        "reduce_sim": reduce_sim,
        "total_prompt_len": top_k * L,
        "prompted_embedding": prompted_embedding,
    }


if __name__ == "__main__":
    # Module hyper-parameters (small, consistent with the reference __init__).
    batch = 2
    seq = 8
    embed_dim = 32
    pool_size = 8
    length = 5
    top_k = 4

    key = jax.random.PRNGKey(0)
    k_prompt, k_pkey, k_x = jax.random.split(key, 3)

    # Deterministic parameter init: uniform(-1, 1), matching prompt_init='uniform'
    # and prompt_key_init='uniform'.
    prompt = jax.random.uniform(
        k_prompt, (pool_size, length, embed_dim),
        dtype=jnp.float32, minval=-1.0, maxval=1.0)
    prompt_key = jax.random.uniform(
        k_pkey, (pool_size, embed_dim),
        dtype=jnp.float32, minval=-1.0, maxval=1.0)

    x_embed = jax.random.normal(k_x, (batch, seq, embed_dim), dtype=jnp.float32)

    out = l2p_prompt_forward(x_embed, prompt, prompt_key, top_k=top_k)
    jax.block_until_ready(out["prompted_embedding"])
    jax.block_until_ready(out["reduce_sim"])

    # shape sanity
    assert out["similarity"].shape == (batch, pool_size)
    assert out["prompt_idx"].shape == (batch, top_k)
    assert out["prompted_embedding"].shape == (batch, top_k * length + seq, embed_dim)
    assert out["total_prompt_len"] == top_k * length

    # numeric sanity against a plain-JAX reference of the module's forward
    def _ref_forward(x, pr, pk, k):
        xm = jnp.mean(x, axis=1)
        pn = pk * jax.lax.rsqrt(
            jnp.maximum(jnp.sum(pk * pk, axis=1, keepdims=True), 1e-12))
        xn = xm * jax.lax.rsqrt(
            jnp.maximum(jnp.sum(xm * xm, axis=1, keepdims=True), 1e-12))
        sim = xn @ pn.T
        _, idx = jax.lax.top_k(sim, k)
        bp = pr[idx].reshape(x.shape[0], k * pr.shape[1], pr.shape[2])
        pe = jnp.concatenate([bp, x], axis=1)
        rs = jnp.sum(pn[idx] * xn[:, None, :]) / x.shape[0]
        return sim, xn, pe, rs

    sim_ref, xn_ref, pe_ref, rs_ref = _ref_forward(x_embed, prompt, prompt_key, top_k)
    assert jnp.allclose(out["similarity"], sim_ref, atol=1e-5)
    assert jnp.allclose(out["x_embed_norm"], xn_ref, atol=1e-5)
    assert jnp.allclose(out["prompted_embedding"], pe_ref, atol=1e-5)
    assert jnp.allclose(out["reduce_sim"], rs_ref, atol=1e-5)

    print("KERNEL_OK")
</pallas_src>

<mosaic_0001>
module attributes {stable_mosaic.version = 11 : i64} {
  func.func @_similarity_kernel(%arg0: i32, %arg1: memref<32x8xf32, #tpu.memory_space<vmem>>, %arg2: memref<2x8x32xf32, #tpu.memory_space<vmem>>, %arg3: memref<2x32xf32, #tpu.memory_space<vmem>>, %arg4: memref<2x8xf32, #tpu.memory_space<vmem>>) attributes {dimension_semantics = [#tpu.dimension_semantics<parallel>], iteration_bounds = array<i64: 1>, scalar_prefetch = 0 : i64, scratch_operands = 0 : i64, tpu.core_type = #tpu.core_type<tc>, window_params = [{pipeline_mode = #tpu.pipeline_mode<synchronous>, transform_indices = @transform_0, window_bounds = array<i64: 32, 8>}, {transform_indices = @transform_1, window_bounds = array<i64: 2, 8, 32>}, {transform_indices = @transform_2, window_bounds = array<i64: 2, 32>}, {transform_indices = @transform_3, window_bounds = array<i64: 2, 8>}]} {
    %c0 = arith.constant 0 : index
    %c0_0 = arith.constant 0 : index
    %0 = vector.load %arg1[%c0, %c0_0] : memref<32x8xf32, #tpu.memory_space<vmem>>, vector<32x8xf32>
    %1 = arith.mulf %0, %0 : vector<32x8xf32>
    %cst = arith.constant dense<0.000000e+00> : vector<8xf32>
    %2 = vector.multi_reduction <add>, %1, %cst [0] : vector<32x8xf32> to vector<8xf32>
    %3 = vector.shape_cast %2 : vector<8xf32> to vector<1x8xf32>
    %cst_1 = arith.constant 9.99999996E-13 : f32
    %4 = vector.broadcast %cst_1 : f32 to vector<1x8xf32>
    %5 = arith.maximumf %3, %4 : vector<1x8xf32>
    %6 = math.rsqrt %5 : vector<1x8xf32>
    %7 = vector.broadcast %6 : vector<1x8xf32> to vector<32x8xf32>
    %8 = arith.mulf %0, %7 : vector<32x8xf32>
    %c0_2 = arith.constant 0 : index
    %c0_3 = arith.constant 0 : index
    %c0_4 = arith.constant 0 : index
    %9 = vector.load %arg2[%c0_2, %c0_3, %c0_4] : memref<2x8x32xf32, #tpu.memory_space<vmem>>, vector<2x8x32xf32>
    %cst_5 = arith.constant dense<0.000000e+00> : vector<2x32xf32>
    %10 = vector.multi_reduction <add>, %9, %cst_5 [1] : vector<2x8x32xf32> to vector<2x32xf32>
    %cst_6 = arith.constant 8.000000e+00 : f32
    %11 = vector.broadcast %cst_6 : f32 to vector<2x32xf32>
    %12 = arith.divf %10, %11 : vector<2x32xf32>
    %13 = arith.mulf %12, %12 : vector<2x32xf32>
    %cst_7 = arith.constant dense<0.000000e+00> : vector<2xf32>
    %14 = vector.multi_reduction <add>, %13, %cst_7 [1] : vector<2x32xf32> to vector<2xf32>
    %15 = vector.shape_cast %14 : vector<2xf32> to vector<2x1xf32>
    %cst_8 = arith.constant 9.99999996E-13 : f32
    %16 = vector.broadcast %cst_8 : f32 to vector<2x1xf32>
    %17 = arith.maximumf %15, %16 : vector<2x1xf32>
    %18 = math.rsqrt %17 : vector<2x1xf32>
    %19 = vector.broadcast %18 : vector<2x1xf32> to vector<2x32xf32>
    %20 = arith.mulf %12, %19 : vector<2x32xf32>
    %c0_9 = arith.constant 0 : index
    %c0_10 = arith.constant 0 : index
    %21 = vector.load %arg3[%c0_9, %c0_10] : memref<2x32xf32, #tpu.memory_space<vmem>>, vector<2x32xf32>
    tpu.vector_store %arg3[%c0_9, %c0_10], %20 {strides = array<i32>} : memref<2x32xf32, #tpu.memory_space<vmem>>, vector<2x32xf32>,
    %cst_11 = arith.constant dense<0.000000e+00> : vector<2x8xf32>
    %22 = tpu.matmul %20, %8, %cst_11 {dimension_numbers = #tpu.dot_dimension_numbers<[1], [0], [0], [1], [0, 0, 1, 1], [], []>} : vector<2x32xf32>, vector<32x8xf32>, vector<2x8xf32> -> vector<2x8xf32>
    %c0_12 = arith.constant 0 : index
    %c0_13 = arith.constant 0 : index
    %23 = vector.load %arg4[%c0_12, %c0_13] : memref<2x8xf32, #tpu.memory_space<vmem>>, vector<2x8xf32>
    tpu.vector_store %arg4[%c0_12, %c0_13], %22 {strides = array<i32>} : memref<2x8xf32, #tpu.memory_space<vmem>>, vector<2x8xf32>,
    return
  }
  func.func @transform_0(%arg0: i32) -> (i32, i32) {
    %c0_i32 = arith.constant 0 : i32
    %c0_i32_0 = arith.constant 0 : i32
    %c0_i32_1 = arith.constant 0 : i32
    return %c0_i32, %c0_i32_0 : i32, i32
  }
  func.func @transform_1(%arg0: i32) -> (i32, i32, i32) {
    %c0_i32 = arith.constant 0 : i32
    %c0_i32_0 = arith.constant 0 : i32
    %c0_i32_1 = arith.constant 0 : i32
    return %arg0, %c0_i32, %c0_i32_0 : i32, i32, i32
  }
  func.func @transform_2(%arg0: i32) -> (i32, i32) {
    %c0_i32 = arith.constant 0 : i32
    %c0_i32_0 = arith.constant 0 : i32
    return %arg0, %c0_i32 : i32, i32
  }
  func.func @transform_3(%arg0: i32) -> (i32, i32) {
    %c0_i32 = arith.constant 0 : i32
    %c0_i32_0 = arith.constant 0 : i32
    return %arg0, %c0_i32 : i32, i32
  }
}

</mosaic_0001>

<llo_original>
// kernel: tpu_custom_call.1
$region0: #{tpu_custom_call.1}
  #allocation0 [shape = 'u32[]', space=smem, size = 0x4, offset = 0x4, fixed_abs, tag = 'smem constant byte address 0x4 - core index']
  #allocation1 [shape = 'u32[144,128]{1,0:T(1,128)}', space=vmem, size = 0x12000, scoped, tag = 'internal scratch']
  %s0 = inlined_call_operand.vmem [shape: f32[32,8], index: 0, kind: input, shape index: {}]
  %s1 = inlined_call_operand.vmem [shape: f32[2,8,32], index: 1, kind: input, shape index: {}]
  %s2 = inlined_call_operand.hbm [shape: f32[2,32], index: 2, kind: output, shape index: {0}]
  %s3 = inlined_call_operand.hbm [shape: f32[2,8], index: 3, kind: output, shape index: {1}]
  %4 = xla_tuple %s2, %s3
  %s5 = sld [smem:[#allocation0]]
  $region26: #{tpu_custom_call.1} parent=0
    _
  %s7 = ssub.s32 1, %s5
  %s8 = scalar_select 0, %s7, %s5
  $region1: #{tpu_custom_call.1} parent=0
    #allocation2 [shape = 'u8[1024]{0}', space=vmem, size = 0x400, scoped, tag = 'output window, operand 0, single buffered']
    #allocation3 [shape = 's32[1]{0}', space=sflag, size = 0x4, scoped, tag = 'scoped memory for tpu_custom_call.1']
    #allocation4 [shape = 'u8[1024]{0}', space=vmem, size = 0x400, scoped, tag = 'output window, operand 1, single buffered']
    #allocation5 [shape = 's32[1]{0}', space=sflag, size = 0x4, scoped, tag = 'scoped memory for tpu_custom_call.1']
    %9 = vsyncpa [#allocation3], 0
    %10 = vsyncpa [#allocation5], 0
    // Predicated region
    $region2: #{tpu_custom_call.1} parent=1 // pred_check
      _
    $region3: #{tpu_custom_call.1} parent=1 // pred_check_branch
      %12 = sbr.rel (0) target = $region5
    $region4: #{tpu_custom_call.1} parent=1 // pred_region
      _
    $region5: #{tpu_custom_call.1} parent=1 // pred_fallthru
      _
    // Predicated region
    $region6: #{tpu_custom_call.1} parent=1 // pred_check
      _
    $region7: #{tpu_custom_call.1} parent=1 // pred_check_branch
      %14 = sbr.rel (0) target = $region9
    $region8: #{tpu_custom_call.1} parent=1 // pred_region
      _
    $region9: #{tpu_custom_call.1} parent=1 // pred_fallthru
      _
    %v15 = vld [vmem:[%s0] sm:$0xff]
    %v16 = vld [vmem:[%s0 + $0x8] sm:$0xff]
    %v17 = vld [vmem:[%s0 + $0x10] sm:$0xff]
    %v18 = vld [vmem:[%s0 + $0x18] sm:$0xff]
    %v19 = vmul.f32 %v15, %v15
    %v20 = vmul.f32 %v16, %v16
    %v21 = vmul.f32 %v17, %v17
    %v22 = vmul.f32 %v18, %v18
    %vm23 = vcmask 64512
    %v24 = vsel %vm23, %v19, 0.0
    %v25 = vsel %vm23, %v20, 0.0
    %v26 = vadd.f32 %v24, %v25
    %v27 = vsel %vm23, %v21, 0.0
    %v28 = vadd.f32 %v26, %v27
    %v29 = vsel %vm23, %v22, 0.0
    %v30 = vadd.f32 %v28, %v29
    %v31 = vrot.slane %v30, 4
    %v32 = vadd.f32 %v30, %v31
    %v33 = vrot.slane %v32, 2
    %v34 = vadd.f32 %v32, %v33
    %v35 = vrot.slane %v34, 1
    %v36 = vadd.f32 %v34, %v35
    %v37 = vmax.f32 %v36, 1e-12
    %v38 = vrsqrt.pop %v37
    %v39 = vmul.f32 %v15, %v38
    %v40 = vmul.f32 %v16, %v38
    %v41 = vmul.f32 %v17, %v38
    %v42 = vmul.f32 %v18, %v38
    %v43 = vld [vmem:[%s1] sm:$0xff]
    %v44 = vld [vmem:[%s1 + $0x8] sm:$0xff]
    %vm45 = vcmask 261120
    %v46 = vsel %vm45, %v43, 0.0
    %v47 = vrot.slane %v46, 4
    %v48 = vadd.f32 %v46, %v47
    %v49 = vrot.slane %v48, 2
    %v50 = vadd.f32 %v48, %v49
    %v51 = vrot.slane %v50, 1
    %v52 = vadd.f32 %v50, %v51
    %v53 = vsel %vm45, %v44, 0.0
    %v54 = vrot.slane %v53, 4
    %v55 = vadd.f32 %v53, %v54
    %v56 = vrot.slane %v55, 2
    %v57 = vadd.f32 %v55, %v56
    %v58 = vrot.slane %v57, 1
    %v59 = vadd.f32 %v57, %v58
    %v60 = vrcp.pop 8.0
    %v61 = vmul.f32 %v52, %v60
    %v62 = vmul.f32 %v59, %v60
    %v63 = vmul.f32 %v61, %v61
    %v64 = vmul.f32 %v62, %v62
    %vm67 = vcmask 1041409
    %v68 = vsel %vm67, %v64, %v63
    %vm70 = vcmask 254976
    %v71 = vsel %vm70, %v68, 0.0
    %72 = vadd.xlane.f32.xlu0 %v71
    %v73 = vpop.xlane.xlu0 %72
    %v74 = vmax.f32 %v73, 1e-12
    %v75 = vrsqrt.pop %v74
    %v77 = vrot.slane %v75, 1
    %v80 = vmul.f32 %v61, %v75
    %v81 = vmul.f32 %v62, %v77
    %v84 = vrot.slane %v81, 7
    %v85 = vsel %vm67, %v84, %v80
    %87 = vst.msk [vmem:[#allocation2] sm:$0x3] %vm70, %v85
    %v88 = vsel %vm45, %v85, 0
    %90 = vmatprep.subr.mxu0 0.0
    %91 = vmatpush1.msra.mxu0 %v39
    %92 = vmatprep.subr.mxu0 0.0
    %93 = vmatpush1.msra.mxu0 %v40
    %94 = vmatprep.subr.mxu0 0.0
    %95 = vmatpush1.msra.mxu0 %v41
    %96 = vmatprep.subr.mxu0 0.0
    %97 = vmatpush1.msra.mxu0 %v42
    %98 = vmatprep.subr.mxu0 0.0
    %99 = vmatpush1.msra.mxu0 0.0
    %100 = vmatprep.subr.mxu0 0.0
    %101 = vmatpush1.msra.mxu0 0.0
    %102 = vmatprep.subr.mxu0 0.0
    %103 = vmatpush1.msra.mxu0 0.0
    %104 = vmatprep.subr.mxu0 0.0
    %105 = vmatpush1.msra.mxu0 0.0
    %106 = vmatprep.subr.mxu0 0.0
    %107 = vmatpush1.msra.mxu0 0.0
    %108 = vmatprep.subr.mxu0 0.0
    %109 = vmatpush1.msra.mxu0 0.0
    %110 = vmatprep.subr.mxu0 0.0
    %111 = vmatpush1.msra.mxu0 0.0
    %112 = vmatprep.subr.mxu0 0.0
    %113 = vmatpush1.msra.mxu0 0.0
    %114 = vmatprep.subr.mxu0 0.0
    %115 = vmatpush1.msra.mxu0 0.0
    %116 = vmatprep.subr.mxu0 0.0
    %117 = vmatpush1.msra.mxu0 0.0
    %118 = vmatprep.subr.mxu0 0.0
    %119 = vmatpush1.msra.mxu0 0.0
    %120 = vmatprep.subr.mxu0 0.0
    %121 = vmatpush1.msra.mxu0 0.0
    %122 = vmatprep.subr.mxu0 0.0
    %123 = vmatpush1.msra.mxu0 0.0
    %124 = vmatprep.subr.mxu0 0.0
    %125 = vmatpush1.msra.mxu0 0.0
    %126 = vmatprep.subr.mxu0 0.0
    %127 = vmatpush1.msra.mxu0 0.0
    %128 = vmatprep.subr.mxu0 0.0
    %129 = vmatpush1.msra.mxu0 0.0
    %130 = vmatprep.subr.mxu0 0.0
    %131 = vmatpush1.msra.mxu0 0.0
    %132 = vmatprep.subr.mxu0 0.0
    %133 = vmatpush1.msra.mxu0 0.0
    %134 = vmatprep.subr.mxu0 0.0
    %135 = vmatpush1.msra.mxu0 0.0
    %136 = vmatprep.subr.mxu0 0.0
    %137 = vmatpush1.msra.mxu0 0.0
    %138 = vmatprep.subr.mxu0 0.0
    %139 = vmatpush1.msra.mxu0 0.0
    %140 = vmatprep.subr.mxu0 0.0
    %141 = vmatpush1.msra.mxu0 0.0
    %142 = vmatprep.subr.mxu0 0.0
    %143 = vmatpush1.msra.mxu0 0.0
    %144 = vmatprep.subr.mxu0 0.0
    %145 = vmatpush1.msra.mxu0 0.0
    %146 = vmatprep.subr.mxu0 0.0
    %147 = vmatpush1.msra.mxu0 0.0
    %148 = vmatprep.subr.mxu0 0.0
    %149 = vmatpush1.msra.mxu0 0.0
    %150 = vmatprep.subr.mxu0 0.0
    %151 = vmatpush1.msra.mxu0 0.0
    %152 = vmatprep.subr.mxu0 0.0
    %153 = vmatpush1.msra.mxu0 0.0
    %154 = vmatprep.mubr.f32.mxu0 0.0
    %155 = vmatmul.mubr.f32.gmra.mrb[0].mxu0 %v88
    %v156 = vpop.f32.mrb[0].mxu0
    %v157 = vadd.f32 0.0, %v156
    %v158 = vpop.f32.mrb[0].mxu0
    %159 = vdwg.mxu0
    %vm160 = vcmask 58368
    %161 = vst.msk [vmem:[#allocation4] sm:$0x3] %vm160, %v157
    // Predicated region
    $region10: #{tpu_custom_call.1} parent=1 // pred_check
      _
    $region11: #{tpu_custom_call.1} parent=1 // pred_check_branch
      %163 = sbr.rel (0) target = $region13
    $region12: #{tpu_custom_call.1} parent=1 // pred_region
      %s165 = ssub.s32 32, 32
      %166 = vsyncadd [#allocation3], %s165
      %s168 = sshll.u32 [#allocation2], 4
      %s169 = int_to_ptr.vmem [resolvable:$true] %s168
      %171 = dma.vmem_to_hbm [thread:$0]  %s169, 32, %s2, [#allocation3]
    $region13: #{tpu_custom_call.1} parent=1 // pred_fallthru
      _
    // Predicated region
    $region14: #{tpu_custom_call.1} parent=1 // pred_check
      _
    $region15: #{tpu_custom_call.1} parent=1 // pred_check_branch
      %173 = sbr.rel (0) target = $region17
    $region16: #{tpu_custom_call.1} parent=1 // pred_region
      %s175 = ssub.s32 32, 32
      %176 = vsyncadd [#allocation5], %s175
      %s178 = sshll.u32 [#allocation4], 4
      %s179 = int_to_ptr.vmem [resolvable:$true] %s178
      %181 = dma.vmem_to_hbm [thread:$0]  %s179, 32, %s3, [#allocation5]
    $region17: #{tpu_custom_call.1} parent=1 // pred_fallthru
      _
    // Predicated region
    $region18: #{tpu_custom_call.1} parent=1 // pred_check
      _
    $region19: #{tpu_custom_call.1} parent=1 // pred_check_branch
      %183 = sbr.rel (0) target = $region21
    $region20: #{tpu_custom_call.1} parent=1 // pred_region
      %184 = dma.done [#allocation3], 32
    $region21: #{tpu_custom_call.1} parent=1 // pred_fallthru
      _
    // Predicated region
    $region22: #{tpu_custom_call.1} parent=1 // pred_check
      _
    $region23: #{tpu_custom_call.1} parent=1 // pred_check_branch
      %186 = sbr.rel (0) target = $region25
    $region24: #{tpu_custom_call.1} parent=1 // pred_region
      %187 = dma.done [#allocation5], 32
    $region25: #{tpu_custom_call.1} parent=1 // pred_fallthru
      _
    %188 = vsyncpa [#allocation3], 1
    %189 = vsyncpa [#allocation5], 1

</llo_original>
